<compile_context>
chip_gen: v7x
topology: tpu7x:2x2x1
jax: 0.10.0
libtpu: 0.0.40
codegen_flags: <defaults>
</compile_context>

<pallas_src>
import functools

import numpy as np

import jax
import jax.numpy as jnp
from jax.experimental import pallas as pl
from jax.experimental.pallas import tpu as pltpu


def _yolo_v1_loss_kernel(pred_ref, tgt_ref, out_ref, *, s, n_cells):
    """One grid block: (TILE, 30) natural-layout tile -> (1, 8, 1) partials.

    The block is transposed in-kernel (XLU) to feature-major (30, TILE):
    rows 0..4 = box0 [x, y, w, h, c], rows 5..9 = box1, rows 10..29 = class
    scores; lanes = grid cells.  Output rows:
    [loc, contain, not_contain, noobj, class, 0, 0, 0] raw (unscaled) sums.
    """
    tile = pred_ref.shape[0]
    inv_s = jnp.float32(1.0 / s)

    # cast first (no-op for f32, supports bf16 storage), then XLU transpose
    p = jnp.transpose(pred_ref[...].astype(jnp.float32))    # (30, TILE)
    t = jnp.transpose(tgt_ref[...].astype(jnp.float32))

    # validity mask for the (possibly) overhanging last block
    lane = jax.lax.broadcasted_iota(jnp.int32, (1, tile), 1)
    cell = pl.program_id(0) * tile + lane
    valid = cell < n_cells

    conf_t = t[4:5, :]                                       # (1, TILE)
    has = jnp.logical_and(conf_t > 0.0, valid)               # object cells
    noo = jnp.logical_and(conf_t == 0.0, valid)              # no-object cells

    # ---- no-object confidence + class terms (only consumed rows) ----------
    dc0 = p[4:5, :] - t[4:5, :]
    dc1 = p[9:10, :] - t[9:10, :]
    noo_per = dc0 * dc0 + dc1 * dc1
    dcl = p[10:30, :] - t[10:30, :]
    class_per = jnp.sum(dcl * dcl, axis=0, keepdims=True)

    # ---- IOU of both predicted boxes vs. the (box-0) ground truth ---------
    def to_xyxy(b):                                          # b: (4, TILE)
        xy = b[0:2, :] * inv_s
        half = b[2:4, :] * 0.5
        return xy - half, xy + half                          # (lt, rb)

    def iou(a_lt, a_rb, b_lt, b_rb):
        lt = jnp.maximum(a_lt, b_lt)
        rb = jnp.minimum(a_rb, b_rb)
        wh = jnp.maximum(rb - lt, 0.0)
        inter = wh[0:1, :] * wh[1:2, :]
        awh = a_rb - a_lt
        bwh = b_rb - b_lt
        union = awh[0:1, :] * awh[1:2, :] + bwh[0:1, :] * bwh[1:2, :] - inter
        return inter / union                                 # exact divide

    g_lt, g_rb = to_xyxy(t[0:4, :])
    p0_lt, p0_rb = to_xyxy(p[0:4, :])
    p1_lt, p1_rb = to_xyxy(p[5:9, :])
    iou0 = iou(p0_lt, p0_rb, g_lt, g_rb)
    iou1 = iou(p1_lt, p1_rb, g_lt, g_rb)

    # torch argmax returns the first max on ties -> box 1 only if strictly >.
    resp1 = iou1 > iou0                                      # (1, TILE) bool
    max_iou = jnp.maximum(iou0, iou1)

    # responsible / not-responsible selection on packed 5-row halves
    pr = jnp.where(resp1, p[5:10, :], p[0:5, :])             # responsible pred
    tr = jnp.where(resp1, t[5:10, :], t[0:5, :])             # matching target
    pn_c = jnp.where(resp1, p[4:5, :], p[9:10, :])           # other box conf

    contain_per = (pr[4:5, :] - max_iou) ** 2
    dxy = pr[0:2, :] - tr[0:2, :]
    dwh = jnp.sqrt(pr[2:4, :]) - jnp.sqrt(tr[2:4, :])
    loc_per = jnp.sum(dxy * dxy + dwh * dwh, axis=0, keepdims=True)
    nc_per = pn_c * pn_c

    # ---- single fused cross-lane reduction of the five masked terms -------
    zero = jnp.zeros_like(loc_per)
    stacked = jnp.concatenate([
        jnp.where(has, loc_per, 0.0),
        jnp.where(has, contain_per, 0.0),
        jnp.where(has, nc_per, 0.0),
        jnp.where(noo, noo_per, 0.0),
        jnp.where(has, class_per, 0.0),
        zero, zero, zero], axis=0)                           # (8, TILE)
    out_ref[...] = jnp.sum(stacked, axis=-1, keepdims=True).reshape(1, 8, 1)


def _round_up(x, m):
    return (x + m - 1) // m * m


def yolo_v1_loss(predict_tensor, target_tensor, *, s=7, b=2, l_coord=5.0,
                 l_noobj=0.5, max_tile=8192):
    """Pallas equivalent of YoloV1Loss.forward -> 5-tuple of scalar losses."""
    assert b == 2, "kernel mirrors the reference module with B=2"
    n = predict_tensor.shape[0]
    feat = b * 5 + 20                                        # 30
    assert predict_tensor.shape == (n, s, s, feat)
    assert target_tensor.shape == (n, s, s, feat)
    c = n * s * s
    c128 = _round_up(c, 128)
    max_tile = _round_up(max_tile, 128)

    # --- tile / grid selection ---------------------------------------------
    grid = max(1, pl.cdiv(c128, max_tile))
    if grid == 1 and c128 > 1024:
        grid = 2                      # enough work: use both TCs on v7x
    if grid > 1 and grid % 2 == 1:
        grid += 1                     # even grid -> balanced 2-TC split
    if grid == 1:
        tile = c                      # single block with exact extent
    else:
        tile = _round_up(pl.cdiv(c, grid), 128)
        grid = pl.cdiv(c, tile)       # last block overhangs < tile, never empty

    # free row-major collapse; no transpose / pad pass in HBM
    pred2d = predict_tensor.reshape(c, feat)
    tgt2d = target_tensor.reshape(c, feat)

    kernel = functools.partial(_yolo_v1_loss_kernel, s=float(s), n_cells=c)

    partials = pl.pallas_call(
        kernel,
        out_shape=jax.ShapeDtypeStruct((grid, 8, 1), jnp.float32),
        grid=(grid,),
        in_specs=[pl.BlockSpec((tile, feat), lambda i: (i, 0)),
                  pl.BlockSpec((tile, feat), lambda i: (i, 0))],
        out_specs=pl.BlockSpec((1, 8, 1), lambda i: (i, 0, 0)),
        compiler_params=pltpu.CompilerParams(
            dimension_semantics=("parallel",),
            vmem_limit_bytes=32 * 1024 * 1024),
    )(pred2d, tgt2d)

    totals = jnp.sum(partials[:, :, 0], axis=0)              # (8,) tiny reduce
    inv_n = 1.0 / float(n)
    return (l_coord * totals[0] * inv_n,
            2.0 * totals[1] * inv_n,
            totals[2] * inv_n,
            l_noobj * totals[3] * inv_n,
            totals[4] * inv_n)


# ---------------------------------------------------------------------------
# Pure numpy reference (mirrors the PyTorch code path) used only for checking.
# ---------------------------------------------------------------------------
def _compute_iou_np(box1, box2):
    lt = np.maximum(box1[:, None, :2], box2[None, :, :2])
    rb = np.minimum(box1[:, None, 2:], box2[None, :, 2:])
    wh = np.clip(rb - lt, 0.0, None)
    inter = wh[:, :, 0] * wh[:, :, 1]
    a1 = (box1[:, 2] - box1[:, 0]) * (box1[:, 3] - box1[:, 1])
    a2 = (box2[:, 2] - box2[:, 0]) * (box2[:, 3] - box2[:, 1])
    return inter / (a1[:, None] + a2[None, :] - inter)


def _ref_loss_numpy(pred, tgt, s=7, l_coord=5.0, l_noobj=0.5):
    pred = np.asarray(pred, np.float64)
    tgt = np.asarray(tgt, np.float64)
    n = pred.shape[0]
    coo = tgt[..., 4] > 0
    noo = tgt[..., 4] == 0
    coo_pred, coo_tgt = pred[coo], tgt[coo]
    box_pred = coo_pred[:, :10].reshape(-1, 5)
    class_pred = coo_pred[:, 10:]
    box_tgt = coo_tgt[:, :10].reshape(-1, 5)
    class_tgt = coo_tgt[:, 10:]
    noo_pred, noo_tgt = pred[noo], tgt[noo]
    nooobj = (np.sum((noo_pred[:, 4] - noo_tgt[:, 4]) ** 2) +
              np.sum((noo_pred[:, 9] - noo_tgt[:, 9]) ** 2))
    nb = box_tgt.shape[0]
    resp = np.zeros(nb, bool)
    notresp = np.zeros(nb, bool)
    box_tgt_iou = np.zeros_like(box_tgt)
    for i in range(0, nb, 2):
        b1 = box_pred[i:i + 2]
        b1xy = np.zeros((2, 4))
        b1xy[:, :2] = b1[:, :2] / s - 0.5 * b1[:, 2:4]
        b1xy[:, 2:] = b1[:, :2] / s + 0.5 * b1[:, 2:4]
        b2 = box_tgt[i:i + 1]
        b2xy = np.zeros((1, 4))
        b2xy[:, :2] = b2[:, :2] / s - 0.5 * b2[:, 2:4]
        b2xy[:, 2:] = b2[:, :2] / s + 0.5 * b2[:, 2:4]
        iou = _compute_iou_np(b1xy, b2xy)
        mi = int(np.argmax(iou[:, 0]))
        resp[i + mi] = True
        notresp[i + 1 - mi] = True
        box_tgt_iou[i + mi, 4] = iou[mi, 0]
    bpr, btri, btr = box_pred[resp], box_tgt_iou[resp], box_tgt[resp]
    contain = np.sum((bpr[:, 4] - btri[:, 4]) ** 2)
    loc = (np.sum((bpr[:, :2] - btr[:, :2]) ** 2) +
           np.sum((np.sqrt(bpr[:, 2:4]) - np.sqrt(btr[:, 2:4])) ** 2))
    bpn = box_pred[notresp]
    not_contain = np.sum(bpn[:, 4] ** 2)
    class_loss = np.sum((class_pred - class_tgt) ** 2)
    return (l_coord * loc / n, 2.0 * contain / n, not_contain / n,
            l_noobj * nooobj / n, class_loss / n)


if __name__ == "__main__":
    key = jax.random.PRNGKey(0)
    k1, k2, k3 = jax.random.split(key, 3)
    N, S, FEAT = 2, 7, 30
    # predictions positive (module takes sqrt of predicted w/h)
    pred = jax.random.uniform(k1, (N, S, S, FEAT), jnp.float32, 0.05, 1.0)
    tgt = jax.random.uniform(k2, (N, S, S, FEAT), jnp.float32, 0.05, 1.0)
    # object indicator in target confidence slots (columns 4 and 9)
    obj = (jax.random.uniform(k3, (N, S, S)) > 0.7).astype(jnp.float32)
    tgt = tgt.at[..., 4].set(obj).at[..., 9].set(obj)

    losses = yolo_v1_loss(pred, tgt, s=S, b=2, l_coord=5.0, l_noobj=0.5)
    losses = jax.block_until_ready(losses)

    ref = _ref_loss_numpy(np.array(pred), np.array(tgt), s=S)
    for got, want in zip(losses, ref):
        assert abs(float(got) - want) <= 1e-3 * max(1.0, abs(want)), (got, want)

    print("KERNEL_OK")
</pallas_src>

<mosaic_0001>
module attributes {stable_mosaic.version = 11 : i64} {
  func.func @_yolo_v1_loss_kernel(%arg0: i32, %arg1: memref<98x30xf32, #tpu.memory_space<vmem>>, %arg2: memref<98x30xf32, #tpu.memory_space<vmem>>, %arg3: memref<1x8x1xf32, #tpu.memory_space<vmem>>) attributes {dimension_semantics = [#tpu.dimension_semantics<parallel>], iteration_bounds = array<i64: 1>, scalar_prefetch = 0 : i64, scratch_operands = 0 : i64, tpu.core_type = #tpu.core_type<tc>, window_params = [{transform_indices = @transform_0, window_bounds = array<i64: 98, 30>}, {transform_indices = @transform_1, window_bounds = array<i64: 98, 30>}, {transform_indices = @transform_2, window_bounds = array<i64: 1, 8, 1>}]} {
    %c0 = arith.constant 0 : index
    %c0_0 = arith.constant 0 : index
    %0 = vector.load %arg1[%c0, %c0_0] : memref<98x30xf32, #tpu.memory_space<vmem>>, vector<98x30xf32>
    %1 = tpu.transpose %0, [1, 0] : vector<98x30xf32> -> vector<30x98xf32>
    %c0_1 = arith.constant 0 : index
    %c0_2 = arith.constant 0 : index
    %2 = vector.load %arg2[%c0_1, %c0_2] : memref<98x30xf32, #tpu.memory_space<vmem>>, vector<98x30xf32>
    %3 = tpu.transpose %2, [1, 0] : vector<98x30xf32> -> vector<30x98xf32>
    %4 = tpu.iota {dimensions = array<i32: 1>} : vector<1x98xi32>
    %c98_i32 = arith.constant 98 : i32
    %5 = arith.muli %arg0, %c98_i32 : i32
    %6 = vector.broadcast %5 : i32 to vector<1x98xi32>
    %7 = arith.addi %6, %4 : vector<1x98xi32>
    %c98_i32_3 = arith.constant 98 : i32
    %8 = vector.broadcast %c98_i32_3 : i32 to vector<1x98xi32>
    %9 = arith.cmpi slt, %7, %8 : vector<1x98xi32>
    %10 = vector.extract_strided_slice %3 {offsets = [4, 0], sizes = [1, 98], strides = [1, 1]} : vector<30x98xf32> to vector<1x98xf32>
    %cst = arith.constant 0.000000e+00 : f32
    %11 = vector.broadcast %cst : f32 to vector<1x98xf32>
    %12 = arith.cmpf ogt, %10, %11 : vector<1x98xf32>
    %13 = arith.andi %12, %9 : vector<1x98xi1>
    %cst_4 = arith.constant 0.000000e+00 : f32
    %14 = vector.broadcast %cst_4 : f32 to vector<1x98xf32>
    %15 = arith.cmpf oeq, %10, %14 : vector<1x98xf32>
    %16 = arith.andi %15, %9 : vector<1x98xi1>
    %17 = vector.extract_strided_slice %1 {offsets = [4, 0], sizes = [1, 98], strides = [1, 1]} : vector<30x98xf32> to vector<1x98xf32>
    %18 = vector.extract_strided_slice %3 {offsets = [4, 0], sizes = [1, 98], strides = [1, 1]} : vector<30x98xf32> to vector<1x98xf32>
    %19 = arith.subf %17, %18 : vector<1x98xf32>
    %20 = vector.extract_strided_slice %1 {offsets = [9, 0], sizes = [1, 98], strides = [1, 1]} : vector<30x98xf32> to vector<1x98xf32>
    %21 = vector.extract_strided_slice %3 {offsets = [9, 0], sizes = [1, 98], strides = [1, 1]} : vector<30x98xf32> to vector<1x98xf32>
    %22 = arith.subf %20, %21 : vector<1x98xf32>
    %23 = arith.mulf %19, %19 : vector<1x98xf32>
    %24 = arith.mulf %22, %22 : vector<1x98xf32>
    %25 = arith.addf %23, %24 : vector<1x98xf32>
    %26 = vector.extract_strided_slice %1 {offsets = [10, 0], sizes = [20, 98], strides = [1, 1]} : vector<30x98xf32> to vector<20x98xf32>
    %27 = vector.extract_strided_slice %3 {offsets = [10, 0], sizes = [20, 98], strides = [1, 1]} : vector<30x98xf32> to vector<20x98xf32>
    %28 = arith.subf %26, %27 : vector<20x98xf32>
    %29 = arith.mulf %28, %28 : vector<20x98xf32>
    %cst_5 = arith.constant dense<0.000000e+00> : vector<98xf32>
    %30 = vector.multi_reduction <add>, %29, %cst_5 [0] : vector<20x98xf32> to vector<98xf32>
    %31 = vector.shape_cast %30 : vector<98xf32> to vector<1x98xf32>
    %32 = vector.extract_strided_slice %3 {offsets = [0, 0], sizes = [4, 98], strides = [1, 1]} : vector<30x98xf32> to vector<4x98xf32>
    %33 = vector.extract_strided_slice %32 {offsets = [0, 0], sizes = [2, 98], strides = [1, 1]} : vector<4x98xf32> to vector<2x98xf32>
    %cst_6 = arith.constant 0.142857149 : f32
    %34 = vector.broadcast %cst_6 : f32 to vector<2x98xf32>
    %35 = arith.mulf %33, %34 : vector<2x98xf32>
    %36 = vector.extract_strided_slice %32 {offsets = [2, 0], sizes = [2, 98], strides = [1, 1]} : vector<4x98xf32> to vector<2x98xf32>
    %cst_7 = arith.constant 5.000000e-01 : f32
    %37 = vector.broadcast %cst_7 : f32 to vector<2x98xf32>
    %38 = arith.mulf %36, %37 : vector<2x98xf32>
    %39 = arith.subf %35, %38 : vector<2x98xf32>
    %40 = arith.addf %35, %38 : vector<2x98xf32>
    %41 = vector.extract_strided_slice %1 {offsets = [0, 0], sizes = [4, 98], strides = [1, 1]} : vector<30x98xf32> to vector<4x98xf32>
    %42 = vector.extract_strided_slice %41 {offsets = [0, 0], sizes = [2, 98], strides = [1, 1]} : vector<4x98xf32> to vector<2x98xf32>
    %cst_8 = arith.constant 0.142857149 : f32
    %43 = vector.broadcast %cst_8 : f32 to vector<2x98xf32>
    %44 = arith.mulf %42, %43 : vector<2x98xf32>
    %45 = vector.extract_strided_slice %41 {offsets = [2, 0], sizes = [2, 98], strides = [1, 1]} : vector<4x98xf32> to vector<2x98xf32>
    %cst_9 = arith.constant 5.000000e-01 : f32
    %46 = vector.broadcast %cst_9 : f32 to vector<2x98xf32>
    %47 = arith.mulf %45, %46 : vector<2x98xf32>
    %48 = arith.subf %44, %47 : vector<2x98xf32>
    %49 = arith.addf %44, %47 : vector<2x98xf32>
    %50 = vector.extract_strided_slice %1 {offsets = [5, 0], sizes = [4, 98], strides = [1, 1]} : vector<30x98xf32> to vector<4x98xf32>
    %51 = vector.extract_strided_slice %50 {offsets = [0, 0], sizes = [2, 98], strides = [1, 1]} : vector<4x98xf32> to vector<2x98xf32>
    %cst_10 = arith.constant 0.142857149 : f32
    %52 = vector.broadcast %cst_10 : f32 to vector<2x98xf32>
    %53 = arith.mulf %51, %52 : vector<2x98xf32>
    %54 = vector.extract_strided_slice %50 {offsets = [2, 0], sizes = [2, 98], strides = [1, 1]} : vector<4x98xf32> to vector<2x98xf32>
    %cst_11 = arith.constant 5.000000e-01 : f32
    %55 = vector.broadcast %cst_11 : f32 to vector<2x98xf32>
    %56 = arith.mulf %54, %55 : vector<2x98xf32>
    %57 = arith.subf %53, %56 : vector<2x98xf32>
    %58 = arith.addf %53, %56 : vector<2x98xf32>
    %59 = arith.maximumf %48, %39 : vector<2x98xf32>
    %60 = arith.minimumf %49, %40 : vector<2x98xf32>
    %61 = arith.subf %60, %59 : vector<2x98xf32>
    %cst_12 = arith.constant 0.000000e+00 : f32
    %62 = vector.broadcast %cst_12 : f32 to vector<2x98xf32>
    %63 = arith.maximumf %61, %62 : vector<2x98xf32>
    %64 = vector.extract_strided_slice %63 {offsets = [0, 0], sizes = [1, 98], strides = [1, 1]} : vector<2x98xf32> to vector<1x98xf32>
    %65 = vector.extract_strided_slice %63 {offsets = [1, 0], sizes = [1, 98], strides = [1, 1]} : vector<2x98xf32> to vector<1x98xf32>
    %66 = arith.mulf %64, %65 : vector<1x98xf32>
    %67 = arith.subf %49, %48 : vector<2x98xf32>
    %68 = arith.subf %40, %39 : vector<2x98xf32>
    %69 = vector.extract_strided_slice %67 {offsets = [0, 0], sizes = [1, 98], strides = [1, 1]} : vector<2x98xf32> to vector<1x98xf32>
    %70 = vector.extract_strided_slice %67 {offsets = [1, 0], sizes = [1, 98], strides = [1, 1]} : vector<2x98xf32> to vector<1x98xf32>
    %71 = arith.mulf %69, %70 : vector<1x98xf32>
    %72 = vector.extract_strided_slice %68 {offsets = [0, 0], sizes = [1, 98], strides = [1, 1]} : vector<2x98xf32> to vector<1x98xf32>
    %73 = vector.extract_strided_slice %68 {offsets = [1, 0], sizes = [1, 98], strides = [1, 1]} : vector<2x98xf32> to vector<1x98xf32>
    %74 = arith.mulf %72, %73 : vector<1x98xf32>
    %75 = arith.addf %71, %74 : vector<1x98xf32>
    %76 = arith.subf %75, %66 : vector<1x98xf32>
    %77 = arith.divf %66, %76 : vector<1x98xf32>
    %78 = arith.maximumf %57, %39 : vector<2x98xf32>
    %79 = arith.minimumf %58, %40 : vector<2x98xf32>
    %80 = arith.subf %79, %78 : vector<2x98xf32>
    %cst_13 = arith.constant 0.000000e+00 : f32
    %81 = vector.broadcast %cst_13 : f32 to vector<2x98xf32>
    %82 = arith.maximumf %80, %81 : vector<2x98xf32>
    %83 = vector.extract_strided_slice %82 {offsets = [0, 0], sizes = [1, 98], strides = [1, 1]} : vector<2x98xf32> to vector<1x98xf32>
    %84 = vector.extract_strided_slice %82 {offsets = [1, 0], sizes = [1, 98], strides = [1, 1]} : vector<2x98xf32> to vector<1x98xf32>
    %85 = arith.mulf %83, %84 : vector<1x98xf32>
    %86 = arith.subf %58, %57 : vector<2x98xf32>
    %87 = arith.subf %40, %39 : vector<2x98xf32>
    %88 = vector.extract_strided_slice %86 {offsets = [0, 0], sizes = [1, 98], strides = [1, 1]} : vector<2x98xf32> to vector<1x98xf32>
    %89 = vector.extract_strided_slice %86 {offsets = [1, 0], sizes = [1, 98], strides = [1, 1]} : vector<2x98xf32> to vector<1x98xf32>
    %90 = arith.mulf %88, %89 : vector<1x98xf32>
    %91 = vector.extract_strided_slice %87 {offsets = [0, 0], sizes = [1, 98], strides = [1, 1]} : vector<2x98xf32> to vector<1x98xf32>
    %92 = vector.extract_strided_slice %87 {offsets = [1, 0], sizes = [1, 98], strides = [1, 1]} : vector<2x98xf32> to vector<1x98xf32>
    %93 = arith.mulf %91, %92 : vector<1x98xf32>
    %94 = arith.addf %90, %93 : vector<1x98xf32>
    %95 = arith.subf %94, %85 : vector<1x98xf32>
    %96 = arith.divf %85, %95 : vector<1x98xf32>
    %97 = arith.cmpf ogt, %96, %77 : vector<1x98xf32>
    %98 = arith.maximumf %77, %96 : vector<1x98xf32>
    %99 = vector.extract_strided_slice %1 {offsets = [5, 0], sizes = [5, 98], strides = [1, 1]} : vector<30x98xf32> to vector<5x98xf32>
    %100 = vector.extract_strided_slice %1 {offsets = [0, 0], sizes = [5, 98], strides = [1, 1]} : vector<30x98xf32> to vector<5x98xf32>
    %101 = vector.shape_cast %97 : vector<1x98xi1> to vector<1x98xi1>
    %102 = vector.broadcast %101 : vector<1x98xi1> to vector<5x98xi1>
    %103 = arith.select %102, %99, %100 : vector<5x98xi1>, vector<5x98xf32>
    %104 = vector.extract_strided_slice %3 {offsets = [5, 0], sizes = [5, 98], strides = [1, 1]} : vector<30x98xf32> to vector<5x98xf32>
    %105 = vector.extract_strided_slice %3 {offsets = [0, 0], sizes = [5, 98], strides = [1, 1]} : vector<30x98xf32> to vector<5x98xf32>
    %106 = vector.shape_cast %97 : vector<1x98xi1> to vector<1x98xi1>
    %107 = vector.broadcast %106 : vector<1x98xi1> to vector<5x98xi1>
    %108 = arith.select %107, %104, %105 : vector<5x98xi1>, vector<5x98xf32>
    %109 = vector.extract_strided_slice %1 {offsets = [4, 0], sizes = [1, 98], strides = [1, 1]} : vector<30x98xf32> to vector<1x98xf32>
    %110 = vector.extract_strided_slice %1 {offsets = [9, 0], sizes = [1, 98], strides = [1, 1]} : vector<30x98xf32> to vector<1x98xf32>
    %111 = arith.select %97, %109, %110 : vector<1x98xi1>, vector<1x98xf32>
    %112 = vector.extract_strided_slice %103 {offsets = [4, 0], sizes = [1, 98], strides = [1, 1]} : vector<5x98xf32> to vector<1x98xf32>
    %113 = arith.subf %112, %98 : vector<1x98xf32>
    %114 = arith.mulf %113, %113 : vector<1x98xf32>
    %115 = vector.extract_strided_slice %103 {offsets = [0, 0], sizes = [2, 98], strides = [1, 1]} : vector<5x98xf32> to vector<2x98xf32>
    %116 = vector.extract_strided_slice %108 {offsets = [0, 0], sizes = [2, 98], strides = [1, 1]} : vector<5x98xf32> to vector<2x98xf32>
    %117 = arith.subf %115, %116 : vector<2x98xf32>
    %118 = vector.extract_strided_slice %103 {offsets = [2, 0], sizes = [2, 98], strides = [1, 1]} : vector<5x98xf32> to vector<2x98xf32>
    %119 = math.sqrt %118 : vector<2x98xf32>
    %120 = vector.extract_strided_slice %108 {offsets = [2, 0], sizes = [2, 98], strides = [1, 1]} : vector<5x98xf32> to vector<2x98xf32>
    %121 = math.sqrt %120 : vector<2x98xf32>
    %122 = arith.subf %119, %121 : vector<2x98xf32>
    %123 = arith.mulf %117, %117 : vector<2x98xf32>
    %124 = arith.mulf %122, %122 : vector<2x98xf32>
    %125 = arith.addf %123, %124 : vector<2x98xf32>
    %cst_14 = arith.constant dense<0.000000e+00> : vector<98xf32>
    %126 = vector.multi_reduction <add>, %125, %cst_14 [0] : vector<2x98xf32> to vector<98xf32>
    %127 = vector.shape_cast %126 : vector<98xf32> to vector<1x98xf32>
    %128 = arith.mulf %111, %111 : vector<1x98xf32>
    %cst_15 = arith.constant 0.000000e+00 : f32
    %129 = vector.broadcast %cst_15 : f32 to vector<1x98xf32>
    %cst_16 = arith.constant 0.000000e+00 : f32
    %130 = vector.broadcast %cst_16 : f32 to vector<1x98xf32>
    %131 = arith.select %13, %127, %130 : vector<1x98xi1>, vector<1x98xf32>
    %cst_17 = arith.constant 0.000000e+00 : f32
    %132 = vector.broadcast %cst_17 : f32 to vector<1x98xf32>
    %133 = arith.select %13, %114, %132 : vector<1x98xi1>, vector<1x98xf32>
    %cst_18 = arith.constant 0.000000e+00 : f32
    %134 = vector.broadcast %cst_18 : f32 to vector<1x98xf32>
    %135 = arith.select %13, %128, %134 : vector<1x98xi1>, vector<1x98xf32>
    %cst_19 = arith.constant 0.000000e+00 : f32
    %136 = vector.broadcast %cst_19 : f32 to vector<1x98xf32>
    %137 = arith.select %16, %25, %136 : vector<1x98xi1>, vector<1x98xf32>
    %cst_20 = arith.constant 0.000000e+00 : f32
    %138 = vector.broadcast %cst_20 : f32 to vector<1x98xf32>
    %139 = arith.select %13, %31, %138 : vector<1x98xi1>, vector<1x98xf32>
    %140 = tpu.concatenate %131, %133, %135, %137, %139, %129, %129, %129 in 0 : vector<1x98xf32>, vector<1x98xf32>, vector<1x98xf32>, vector<1x98xf32>, vector<1x98xf32>, vector<1x98xf32>, vector<1x98xf32>, vector<1x98xf32> -> vector<8x98xf32>
    %cst_21 = arith.constant dense<0.000000e+00> : vector<8xf32>
    %141 = vector.multi_reduction <add>, %140, %cst_21 [1] : vector<8x98xf32> to vector<8xf32>
    %142 = vector.shape_cast %141 : vector<8xf32> to vector<8x1xf32>
    %143 = vector.shape_cast %142 : vector<8x1xf32> to vector<1x8x1xf32>
    %c0_22 = arith.constant 0 : index
    %c0_23 = arith.constant 0 : index
    %c0_24 = arith.constant 0 : index
    %144 = vector.load %arg3[%c0_22, %c0_23, %c0_24] : memref<1x8x1xf32, #tpu.memory_space<vmem>>, vector<1x8x1xf32>
    tpu.vector_store %arg3[%c0_22, %c0_23, %c0_24], %143 {strides = array<i32>} : memref<1x8x1xf32, #tpu.memory_space<vmem>>, vector<1x8x1xf32>,
    return
  }
  func.func @transform_0(%arg0: i32) -> (i32, i32) {
    %c0_i32 = arith.constant 0 : i32
    %c0_i32_0 = arith.constant 0 : i32
    return %arg0, %c0_i32 : i32, i32
  }
  func.func @transform_1(%arg0: i32) -> (i32, i32) {
    %c0_i32 = arith.constant 0 : i32
    %c0_i32_0 = arith.constant 0 : i32
    return %arg0, %c0_i32 : i32, i32
  }
  func.func @transform_2(%arg0: i32) -> (i32, i32, i32) {
    %c0_i32 = arith.constant 0 : i32
    %c0_i32_0 = arith.constant 0 : i32
    %c0_i32_1 = arith.constant 0 : i32
    return %arg0, %c0_i32, %c0_i32_0 : i32, i32, i32
  }
}

</mosaic_0001>

<llo_original>
// kernel: tpu_custom_call.1
$region0: #{tpu_custom_call.1}
  #allocation0 [shape = 'u32[]', space=smem, size = 0x4, offset = 0x4, fixed_abs, tag = 'smem constant byte address 0x4 - core index']
  #allocation1 [shape = 'u32[144,128]{1,0:T(1,128)}', space=vmem, size = 0x12000, scoped, tag = 'internal scratch']
  %s0 = inlined_call_operand.vmem [shape: f32[98,30], index: 0, kind: input, shape index: {}]
  %s1 = inlined_call_operand.vmem [shape: f32[98,30], index: 1, kind: input, shape index: {}]
  %s2 = inlined_call_operand.vmem [shape: f32[1,8,1], index: 2, kind: output, shape index: {}]
  %s3 = sld [smem:[#allocation0]]
  $region18: #{tpu_custom_call.1} parent=0
    _
  %s5 = ssub.s32 1, %s3
  %s6 = scalar_select 0, %s5, %s3
  // Predicated region
  $region2: #{tpu_custom_call.1} parent=0 // pred_check
    _
  $region3: #{tpu_custom_call.1} parent=0 // pred_check_branch
    %8 = sbr.rel (0) target = $region5
  $region4: #{tpu_custom_call.1} parent=0 // pred_region
    _
  $region5: #{tpu_custom_call.1} parent=0 // pred_fallthru
    _
  // Predicated region
  $region6: #{tpu_custom_call.1} parent=0 // pred_check
    _
  $region7: #{tpu_custom_call.1} parent=0 // pred_check_branch
    %10 = sbr.rel (0) target = $region9
  $region8: #{tpu_custom_call.1} parent=0 // pred_region
    _
  $region9: #{tpu_custom_call.1} parent=0 // pred_fallthru
    _
  %v11 = vld [vmem:[%s0] sm:$0xff]
  %v12 = vld [vmem:[%s0 + $0x8] sm:$0xff]
  %v13 = vld [vmem:[%s0 + $0x10] sm:$0xff]
  %v14 = vld [vmem:[%s0 + $0x18] sm:$0xff]
  %v15 = vld [vmem:[%s0 + $0x20] sm:$0xff]
  %v16 = vld [vmem:[%s0 + $0x28] sm:$0xff]
  %v17 = vld [vmem:[%s0 + $0x30] sm:$0xff]
  %v18 = vld [vmem:[%s0 + $0x38] sm:$0xff]
  %v19 = vld [vmem:[%s0 + $0x40] sm:$0xff]
  %v20 = vld [vmem:[%s0 + $0x48] sm:$0xff]
  %v21 = vld [vmem:[%s0 + $0x50] sm:$0xff]
  %v22 = vld [vmem:[%s0 + $0x58] sm:$0xff]
  %v23 = vld [vmem:[%s0 + $0x60] sm:$0x3]
  %24 = vxpose.xlu0.b32.start [1/16] %v11, 128
  %25 = vxpose.xlu0.b32.cont [2/16] %v12, 128
  %26 = vxpose.xlu0.b32.cont [3/16] %v13, 128
  %27 = vxpose.xlu0.b32.cont [4/16] %v14, 128
  %28 = vxpose.xlu0.b32.cont [5/16] %v15, 128
  %29 = vxpose.xlu0.b32.cont [6/16] %v16, 128
  %30 = vxpose.xlu0.b32.cont [7/16] %v17, 128
  %31 = vxpose.xlu0.b32.cont [8/16] %v18, 128
  %32 = vxpose.xlu0.b32.cont [9/16] %v19, 128
  %33 = vxpose.xlu0.b32.cont [10/16] %v20, 128
  %34 = vxpose.xlu0.b32.cont [11/16] %v21, 128
  %35 = vxpose.xlu0.b32.cont [12/16] %v22, 128
  %36 = vxpose.xlu0.b32.cont [13/16] %v23, 128
  %37 = vxpose.xlu0.b32.cont [14/16] 0.0, 128
  %38 = vxpose.xlu0.b32.cont [15/16] 0.0, 128
  %39 = vxpose.xlu0.b32.end [16/16] 0.0, 128
  %v40 = vpop.trf.xlu0
  %v41 = vpop.trf.xlu0
  %v42 = vpop.trf.xlu0
  %v43 = vpop.trf.xlu0
  %v44 = vpop.trf.xlu0
  %v45 = vpop.trf.xlu0
  %v46 = vpop.trf.xlu0
  %v47 = vpop.trf.xlu0
  %v48 = vpop.trf.xlu0
  %v49 = vpop.trf.xlu0
  %v50 = vpop.trf.xlu0
  %v51 = vpop.trf.xlu0
  %v52 = vpop.trf.xlu0
  %v53 = vpop.trf.xlu0
  %v54 = vpop.trf.xlu0
  %v55 = vpop.trf.xlu0
  %v56 = vld [vmem:[%s1] sm:$0xff]
  %v57 = vld [vmem:[%s1 + $0x8] sm:$0xff]
  %v58 = vld [vmem:[%s1 + $0x10] sm:$0xff]
  %v59 = vld [vmem:[%s1 + $0x18] sm:$0xff]
  %v60 = vld [vmem:[%s1 + $0x20] sm:$0xff]
  %v61 = vld [vmem:[%s1 + $0x28] sm:$0xff]
  %v62 = vld [vmem:[%s1 + $0x30] sm:$0xff]
  %v63 = vld [vmem:[%s1 + $0x38] sm:$0xff]
  %v64 = vld [vmem:[%s1 + $0x40] sm:$0xff]
  %v65 = vld [vmem:[%s1 + $0x48] sm:$0xff]
  %v66 = vld [vmem:[%s1 + $0x50] sm:$0xff]
  %v67 = vld [vmem:[%s1 + $0x58] sm:$0xff]
  %v68 = vld [vmem:[%s1 + $0x60] sm:$0x3]
  %69 = vxpose.xlu0.b32.start [1/16] %v56, 128
  %70 = vxpose.xlu0.b32.cont [2/16] %v57, 128
  %71 = vxpose.xlu0.b32.cont [3/16] %v58, 128
  %72 = vxpose.xlu0.b32.cont [4/16] %v59, 128
  %73 = vxpose.xlu0.b32.cont [5/16] %v60, 128
  %74 = vxpose.xlu0.b32.cont [6/16] %v61, 128
  %75 = vxpose.xlu0.b32.cont [7/16] %v62, 128
  %76 = vxpose.xlu0.b32.cont [8/16] %v63, 128
  %77 = vxpose.xlu0.b32.cont [9/16] %v64, 128
  %78 = vxpose.xlu0.b32.cont [10/16] %v65, 128
  %79 = vxpose.xlu0.b32.cont [11/16] %v66, 128
  %80 = vxpose.xlu0.b32.cont [12/16] %v67, 128
  %81 = vxpose.xlu0.b32.cont [13/16] %v68, 128
  %82 = vxpose.xlu0.b32.cont [14/16] 0.0, 128
  %83 = vxpose.xlu0.b32.cont [15/16] 0.0, 128
  %84 = vxpose.xlu0.b32.end [16/16] 0.0, 128
  %v85 = vpop.trf.xlu0
  %v86 = vpop.trf.xlu0
  %v87 = vpop.trf.xlu0
  %v88 = vpop.trf.xlu0
  %v89 = vpop.trf.xlu0
  %v90 = vpop.trf.xlu0
  %v91 = vpop.trf.xlu0
  %v92 = vpop.trf.xlu0
  %v93 = vpop.trf.xlu0
  %v94 = vpop.trf.xlu0
  %v95 = vpop.trf.xlu0
  %v96 = vpop.trf.xlu0
  %v97 = vpop.trf.xlu0
  %v98 = vpop.trf.xlu0
  %v99 = vpop.trf.xlu0
  %v100 = vpop.trf.xlu0
  %v101 = vlaneseq
  %v102 = vand.u32 %v101, 127
  %s103 = smul.u32 0, 98
  %v104 = vstv %s103
  %v105 = vadd.s32 %v104, %v102
  %vm106 = vcmp.lt.s32.totalorder %v105, 98
  %vm107 = vcmp.gt.f32.partialorder %v85, 0.0
  %vm108 = vmand %vm107, %vm106
  %vm109 = vcmp.eq.f32.partialorder %v85, 0.0
  %vm110 = vmand %vm109, %vm106
  %v111 = vsub.f32 %v40, %v85
  %v112 = vsub.f32 %v41, %v86
  %v113 = vmul.f32 %v111, %v111
  %v114 = vmul.f32 %v112, %v112
  %v116 = vrot.slane %v114, 5
  %v118 = vadd.f32 %v113, %v116
  %v119 = vsub.f32 %v42, %v87
  %v120 = vsub.f32 %v43, %v88
  %v121 = vmul.f32 %v119, %v119
  %v122 = vmul.f32 %v120, %v120
  %vm125 = vcmask 1045504
  %v126 = vrot.slane %v114, 2
  %v127 = vrot.slane %v121, 2
  %v128 = vsel %vm125, %v126, %v127
  %v129 = vrot.slane %v122, 2
  %v130 = vsel %vm125, %v127, %v129
  %vm134 = vcmask 801792
  %v135 = vsel %vm134, %v128, 0.0
  %v136 = vsel %vm134, %v130, 0.0
  %v137 = vadd.f32 %v135, %v136
  %vm138 = vcmask 797696
  %v139 = vsel %vm138, %v129, 0.0
  %v140 = vadd.f32 %v137, %v139
  %v141 = vrot.slane %v140, 4
  %v142 = vadd.f32 %v140, %v141
  %v143 = vrot.slane %v142, 2
  %v144 = vadd.f32 %v142, %v143
  %v145 = vrot.slane %v144, 1
  %v146 = vadd.f32 %v144, %v145
  %v147 = vmul.f32 %v85, 0.14285715
  %v148 = vmul.f32 %v85, 0.5
  %v150 = vrot.slane %v148, 2
  %v152 = vsub.f32 %v147, %v150
  %v153 = vadd.f32 %v147, %v150
  %v154 = vmul.f32 %v40, 0.14285715
  %v155 = vmul.f32 %v40, 0.5
  %v157 = vrot.slane %v155, 2
  %v159 = vsub.f32 %v154, %v157
  %v160 = vadd.f32 %v154, %v157
  %v161 = vmul.f32 %v41, 0.5
  %v163 = vrot.slane %v161, 2
  %v164 = vsel %vm125, %v157, %v163
  %v166 = vsub.f32 %v154, %v164
  %v167 = vadd.f32 %v154, %v164
  %v168 = vmax.f32 %v159, %v152
  %v169 = vmin.f32 %v160, %v153
  %v170 = vsub.f32 %v169, %v168
  %v171 = vmax.f32 %v170, 0.0
  %v173 = vrot.slane %v171, 1
  %v175 = vmul.f32 %v171, %v173
  %v176 = vsub.f32 %v160, %v159
  %v177 = vsub.f32 %v153, %v152
  %v179 = vrot.slane %v176, 1
  %v181 = vmul.f32 %v176, %v179
  %v183 = vrot.slane %v177, 1
  %v185 = vmul.f32 %v177, %v183
  %v186 = vadd.f32 %v181, %v185
  %v187 = vsub.f32 %v186, %v175
  %v188 = vrcp.pop %v187
  %v189 = vmul.f32 %v175, %v188
  %v191 = vrot.slane %v152, 3
  %v193 = vmax.f32 %v166, %v191
  %v195 = vrot.slane %v153, 3
  %v197 = vmin.f32 %v167, %v195
  %v198 = vsub.f32 %v197, %v193
  %v199 = vmax.f32 %v198, 0.0
  %v201 = vrot.slane %v199, 1
  %v203 = vmul.f32 %v199, %v201
  %v204 = vsub.f32 %v167, %v166
  %v206 = vrot.slane %v204, 1
  %v208 = vmul.f32 %v204, %v206
  %v210 = vrot.slane %v185, 3
  %v212 = vadd.f32 %v208, %v210
  %v213 = vsub.f32 %v212, %v203
  %v214 = vrcp.pop %v213
  %v215 = vmul.f32 %v203, %v214
  %v217 = vrot.slane %v189, 3
  %vm219 = vcmp.gt.f32.partialorder %v215, %v217
  %v221 = vrot.slane %v215, 5
  %v223 = vmax.f32 %v189, %v221
  %v224 = vsel %vm219, 1, 0
  %v225 = vlaneseq
  %v226 = vshrl.u32 %v225, 7
  %v227 = vsub.s32 5, %v226
  %v228 = vrot.slane %v224, %v227
  %vm229 = vcmp.eq.s32.totalorder %v228, 1
  %v231 = vrot.slane %v40, 3
  %v233 = vsel %vm229, %v40, %v231
  %v234 = vsel %vm229, %v41, %v231
  %v236 = vrot.slane %v85, 3
  %v238 = vsel %vm229, %v85, %v236
  %v239 = vsel %vm229, %v86, %v236
  %v240 = vrot.slane %v40, 7
  %v243 = vrot.slane %v41, 4
  %v245 = vsel %vm219, %v240, %v243
  %v247 = vrot.slane %v223, 7
  %v249 = vsub.f32 %v234, %v247
  %v250 = vmul.f32 %v249, %v249
  %v251 = vsub.f32 %v233, %v238
  %v252 = vrsqrt.pop %v233
  %v253 = vmul.f32 %v233, %v252
  %vm254 = vcmp.eq.f32.partialorder %v233, inf
  %v255 = vsel %vm254, %v233, %v253
  %vm256 = vcmp.eq.f32.partialorder %v233, 0.0
  %v257 = vand.u32 %v233, 2147483648
  %v258 = vsel %vm256, %v257, %v255
  %v259 = vrsqrt.pop %v234
  %v260 = vmul.f32 %v234, %v259
  %vm261 = vcmp.eq.f32.partialorder %v234, inf
  %v262 = vsel %vm261, %v234, %v260
  %vm263 = vcmp.eq.f32.partialorder %v234, 0.0
  %v264 = vand.u32 %v234, 2147483648
  %v265 = vsel %vm263, %v264, %v262
  %v266 = vrsqrt.pop %v238
  %v267 = vmul.f32 %v238, %v266
  %vm268 = vcmp.eq.f32.partialorder %v238, inf
  %v269 = vsel %vm268, %v238, %v267
  %vm270 = vcmp.eq.f32.partialorder %v238, 0.0
  %v271 = vand.u32 %v238, 2147483648
  %v272 = vsel %vm270, %v271, %v269
  %v273 = vrsqrt.pop %v239
  %v274 = vmul.f32 %v239, %v273
  %vm275 = vcmp.eq.f32.partialorder %v239, inf
  %v276 = vsel %vm275, %v239, %v274
  %vm277 = vcmp.eq.f32.partialorder %v239, 0.0
  %v278 = vand.u32 %v239, 2147483648
  %v279 = vsel %vm277, %v278, %v276
  %v280 = vsub.f32 %v258, %v272
  %v281 = vsub.f32 %v265, %v279
  %v282 = vmul.f32 %v251, %v251
  %v283 = vmul.f32 %v280, %v280
  %v284 = vmul.f32 %v281, %v281
  %v287 = vrot.slane %v283, 2
  %v288 = vrot.slane %v284, 2
  %v289 = vsel %vm125, %v287, %v288
  %v291 = vadd.f32 %v282, %v289
  %v293 = vrot.slane %v291, 5
  %vm295 = vcmask 795648
  %v296 = vsel %vm295, %v293, 0.0
  %v297 = vrot.slane %v296, 4
  %v298 = vadd.f32 %v296, %v297
  %v299 = vrot.slane %v298, 2
  %v300 = vadd.f32 %v298, %v299
  %v301 = vrot.slane %v300, 1
  %v302 = vadd.f32 %v300, %v301
  %v303 = vmul.f32 %v245, %v245
  %v304 = vsel %vm108, %v302, 0.0
  %v306 = vrot.slane %v250, 5
  %v308 = vsel %vm108, %v306, 0.0
  %v310 = vrot.slane %v303, 1
  %v312 = vsel %vm108, %v310, 0.0
  %v313 = vsel %vm110, %v118, 0.0
  %v314 = vsel %vm108, %v146, 0.0
  %v316 = vrot.slane %v304, 4
  %v319 = vrot.slane %v308, 3
  %v322 = vrot.slane %v312, 2
  %v325 = vrot.slane %v313, 1
  %vm327 = vcmask 1040384
  %v328 = vsel %vm327, %v316, %v319
  %vm329 = vcmask 1041408
  %v330 = vsel %vm329, %v328, %v322
  %vm331 = vcmask 1042432
  %v332 = vsel %vm331, %v330, %v325
  %vm333 = vcmask 1043456
  %v334 = vsel %vm333, %v332, %v314
  %vm335 = vcmask 1044480
  %v336 = vsel %vm335, %v334, 0.0
  %v337 = vsel %vm125, %v336, 0.0
  %vm338 = vcmask 1046528
  %v339 = vsel %vm338, %v337, 0.0
  %v340 = vsel %vm134, %v339, 0.0
  %341 = vadd.xlane.f32.xlu0 %v340
  %v342 = vpop.xlane.xlu0 %341
  %vm343 = vcmask 7168
  %344 = vst.msk [vmem:[%s2] sm:$0xff] %vm343, %v342
  // Predicated region
  $region10: #{tpu_custom_call.1} parent=0 // pred_check
    _
  $region11: #{tpu_custom_call.1} parent=0 // pred_check_branch
    %346 = sbr.rel (0) target = $region13
  $region12: #{tpu_custom_call.1} parent=0 // pred_region
    _
  $region13: #{tpu_custom_call.1} parent=0 // pred_fallthru
    _
  // Predicated region
  $region14: #{tpu_custom_call.1} parent=0 // pred_check
    _
  $region15: #{tpu_custom_call.1} parent=0 // pred_check_branch
    %348 = sbr.rel (0) target = $region17
  $region16: #{tpu_custom_call.1} parent=0 // pred_region
    _
  $region17: #{tpu_custom_call.1} parent=0 // pred_fallthru
    _

</llo_original>
